<compile_context>
chip_gen: v5e
topology: v5e:2x2
jax: 0.10.0
libtpu: 0.0.40
codegen_flags: <defaults>
</compile_context>

<pallas_src>
import jax
import jax.numpy as jnp
from jax import lax
from jax.experimental import pallas as pl
from jax.experimental.pallas import tpu as pltpu

EPS = 1e-5
TM_PACKED = 512  # packed rows (each = PACK original rows) per grid tile


def _stats_kernel(x_ref, w_ref, sum_ref, sumsq_ref):
    """Pass 1: accumulate per-(packed-)channel sum and sum-of-squares of z."""
    @pl.when(pl.program_id(0) == 0)
    def _():
        sum_ref[...] = jnp.zeros_like(sum_ref)
        sumsq_ref[...] = jnp.zeros_like(sumsq_ref)

    z = jnp.dot(x_ref[...], w_ref[...], preferred_element_type=jnp.float32)
    sum_ref[...] += jnp.sum(z, axis=0, keepdims=True)
    sumsq_ref[...] += jnp.sum(z * z, axis=0, keepdims=True)


def _normalize_kernel(x_ref, w_ref, scale_ref, shift_ref, o_ref):
    """Pass 2: recompute z for this tile and apply folded BN scale/shift."""
    z = jnp.dot(x_ref[...], w_ref[...], preferred_element_type=jnp.float32)
    o_ref[...] = (z * scale_ref[...] + shift_ref[...]).astype(o_ref.dtype)


def cross_channel_interaction(x, weight, bias, gamma, beta):
    """x: (B, T, C) float32.  weight: (C, C) Conv2d-1x1 weight [out, in].

    `bias` is accepted for API parity with the PyTorch module, but it is a
    provable no-op under training-mode BatchNorm (it cancels in the mean
    subtraction and does not affect the variance), so it is not used.
    """
    del bias
    B, T, C = x.shape
    M = B * T

    # ---- lane-dense packing --------------------------------------------------
    pack = 128 // C if (C < 128 and 128 % C == 0) else 1
    cp = pack * C

    mp = pl.cdiv(M, pack)                     # packed rows before tile padding
    if mp > TM_PACKED:
        tm = TM_PACKED
        mp_pad = pl.cdiv(mp, tm) * tm
    else:
        tm = mp
        mp_pad = mp
    m_pad = mp_pad * pack

    x2 = x.reshape(M, C).astype(jnp.float32)
    if m_pad != M:
        # Zero rows contribute nothing to sum/sumsq (no conv bias applied), and
        # their outputs are sliced off below.
        x2 = jnp.pad(x2, ((0, m_pad - M), (0, 0)))
    xp = x2.reshape(mp_pad, cp)

    # Block-diagonal weight: z_packed = x_packed @ w_bd applies W^T to each of
    # the PACK row-groups packed along the lane dimension.
    w_t = weight.T.astype(jnp.float32)        # (C_in, C_out), z = x @ W^T
    w_bd = jnp.kron(jnp.eye(pack, dtype=jnp.float32), w_t) if pack > 1 else w_t

    grid = (mp_pad // tm,)
    x_spec = pl.BlockSpec((tm, cp), lambda i: (i, 0))
    w_spec = pl.BlockSpec((cp, cp), lambda i: (0, 0))
    vec_spec = pl.BlockSpec((1, cp), lambda i: (0, 0))

    # ---- pass 1: batch statistics (resident accumulator outputs) -------------
    z_sum_p, z_sumsq_p = pl.pallas_call(
        _stats_kernel,
        out_shape=(jax.ShapeDtypeStruct((1, cp), jnp.float32),
                   jax.ShapeDtypeStruct((1, cp), jnp.float32)),
        grid=grid,
        in_specs=[x_spec, w_spec],
        out_specs=(vec_spec, vec_spec),
        compiler_params=pltpu.CompilerParams(
            dimension_semantics=("arbitrary",)),
    )(xp, w_bd)

    # Combine the PACK lane-groups; fold BN into one per-channel scale/shift.
    z_sum = jnp.sum(z_sum_p.reshape(pack, C), axis=0)
    z_sumsq = jnp.sum(z_sumsq_p.reshape(pack, C), axis=0)
    mean = z_sum / M
    var = z_sumsq / M - mean * mean
    inv_std = lax.rsqrt(var + EPS)
    scale = gamma.astype(jnp.float32) * inv_std
    shift = beta.astype(jnp.float32) - mean * scale
    scale_p = jnp.tile(scale, pack).reshape(1, cp)
    shift_p = jnp.tile(shift, pack).reshape(1, cp)

    # ---- pass 2: normalize (fully parallel over M tiles) ----------------------
    out_p = pl.pallas_call(
        _normalize_kernel,
        out_shape=jax.ShapeDtypeStruct((mp_pad, cp), jnp.float32),
        grid=grid,
        in_specs=[x_spec, w_spec, vec_spec, vec_spec],
        out_specs=x_spec,
        compiler_params=pltpu.CompilerParams(
            dimension_semantics=("parallel",)),
    )(xp, w_bd, scale_p, shift_p)

    return out_p.reshape(m_pad, C)[:M].reshape(B, T, C)


def reference(x, weight, bias, gamma, beta):
    """Pure-JAX reference mirroring the PyTorch forward (training-mode BN)."""
    z = jnp.einsum("btk,ck->btc", x, weight) + bias  # 1x1 conv over channels
    mean = jnp.mean(z, axis=(0, 1), keepdims=True)
    var = jnp.mean((z - mean) ** 2, axis=(0, 1), keepdims=True)
    return (z - mean) / jnp.sqrt(var + EPS) * gamma + beta


if __name__ == "__main__":
    B, T, C = 2, 8, 32  # feature_channels = C

    key = jax.random.PRNGKey(0)
    kx, kw, kb = jax.random.split(key, 3)

    x = jax.random.normal(kx, (B, T, C), dtype=jnp.float32)

    # Deterministic synthetic parameters (Conv2d(C, C, 1) weight/bias;
    # BatchNorm2d defaults gamma=1, beta=0).
    bound = 1.0 / (C ** 0.5)
    weight = jax.random.uniform(kw, (C, C), jnp.float32, -bound, bound)
    bias = jax.random.uniform(kb, (C,), jnp.float32, -bound, bound)
    gamma = jnp.ones((C,), jnp.float32)
    beta = jnp.zeros((C,), jnp.float32)

    out = cross_channel_interaction(x, weight, bias, gamma, beta)
    out = jax.block_until_ready(out)

    ref = reference(x, weight, bias, gamma, beta)
    assert out.shape == (B, T, C)
    assert jnp.allclose(out, ref, atol=1e-4, rtol=1e-4), "mismatch vs reference"

    print("KERNEL_OK")
</pallas_src>

<mosaic_0001>
module attributes {stable_mosaic.version = 11 : i64} {
  func.func @_stats_kernel(%arg0: i32, %arg1: memref<4x128xf32, #tpu.memory_space<vmem>>, %arg2: memref<128x128xf32, #tpu.memory_space<vmem>>, %arg3: memref<1x128xf32, #tpu.memory_space<vmem>>, %arg4: memref<1x128xf32, #tpu.memory_space<vmem>>) attributes {dimension_semantics = [#tpu.dimension_semantics<arbitrary>], iteration_bounds = array<i64: 1>, scalar_prefetch = 0 : i64, scratch_operands = 0 : i64, tpu.core_type = #tpu.core_type<tc>, window_params = [{transform_indices = @transform_0, window_bounds = array<i64: 4, 128>}, {pipeline_mode = #tpu.pipeline_mode<synchronous>, transform_indices = @transform_1, window_bounds = array<i64: 128, 128>}, {pipeline_mode = #tpu.pipeline_mode<synchronous>, transform_indices = @transform_2, window_bounds = array<i64: 1, 128>}, {pipeline_mode = #tpu.pipeline_mode<synchronous>, transform_indices = @transform_3, window_bounds = array<i64: 1, 128>}]} {
    %c0_i32 = arith.constant 0 : i32
    %0 = arith.cmpi eq, %arg0, %c0_i32 : i32
    %1 = arith.extui %0 : i1 to i32
    %c0_i32_0 = arith.constant 0 : i32
    %2 = arith.cmpi ne, %1, %c0_i32_0 : i32
    scf.if %2 {
      %cst_14 = arith.constant 0.000000e+00 : f32
      %17 = vector.broadcast %cst_14 : f32 to vector<1x128xf32>
      %c0_15 = arith.constant 0 : index
      %c0_16 = arith.constant 0 : index
      %18 = vector.load %arg3[%c0_15, %c0_16] : memref<1x128xf32, #tpu.memory_space<vmem>>, vector<1x128xf32>
      tpu.vector_store %arg3[%c0_15, %c0_16], %17 {strides = array<i32>} : memref<1x128xf32, #tpu.memory_space<vmem>>, vector<1x128xf32>,
      %cst_17 = arith.constant 0.000000e+00 : f32
      %19 = vector.broadcast %cst_17 : f32 to vector<1x128xf32>
      %c0_18 = arith.constant 0 : index
      %c0_19 = arith.constant 0 : index
      %20 = vector.load %arg4[%c0_18, %c0_19] : memref<1x128xf32, #tpu.memory_space<vmem>>, vector<1x128xf32>
      tpu.vector_store %arg4[%c0_18, %c0_19], %19 {strides = array<i32>} : memref<1x128xf32, #tpu.memory_space<vmem>>, vector<1x128xf32>,
    } else {
    }
    %c0 = arith.constant 0 : index
    %c0_1 = arith.constant 0 : index
    %3 = vector.load %arg1[%c0, %c0_1] : memref<4x128xf32, #tpu.memory_space<vmem>>, vector<4x128xf32>
    %c0_2 = arith.constant 0 : index
    %c0_3 = arith.constant 0 : index
    %4 = vector.load %arg2[%c0_2, %c0_3] : memref<128x128xf32, #tpu.memory_space<vmem>>, vector<128x128xf32>
    %cst = arith.constant dense<0.000000e+00> : vector<4x128xf32>
    %5 = tpu.matmul %3, %4, %cst {dimension_numbers = #tpu.dot_dimension_numbers<[1], [0], [0], [1], [0, 0, 1, 1], [], []>} : vector<4x128xf32>, vector<128x128xf32>, vector<4x128xf32> -> vector<4x128xf32>
    %c0_4 = arith.constant 0 : index
    %c0_5 = arith.constant 0 : index
    %6 = vector.load %arg3[%c0_4, %c0_5] : memref<1x128xf32, #tpu.memory_space<vmem>>, vector<1x128xf32>
    %cst_6 = arith.constant dense<0.000000e+00> : vector<128xf32>
    %7 = vector.multi_reduction <add>, %5, %cst_6 [0] : vector<4x128xf32> to vector<128xf32>
    %8 = vector.shape_cast %7 : vector<128xf32> to vector<1x128xf32>
    %9 = arith.addf %6, %8 : vector<1x128xf32>
    %c0_7 = arith.constant 0 : index
    %c0_8 = arith.constant 0 : index
    %10 = vector.load %arg3[%c0_7, %c0_8] : memref<1x128xf32, #tpu.memory_space<vmem>>, vector<1x128xf32>
    tpu.vector_store %arg3[%c0_7, %c0_8], %9 {strides = array<i32>} : memref<1x128xf32, #tpu.memory_space<vmem>>, vector<1x128xf32>,
    %c0_9 = arith.constant 0 : index
    %c0_10 = arith.constant 0 : index
    %11 = vector.load %arg4[%c0_9, %c0_10] : memref<1x128xf32, #tpu.memory_space<vmem>>, vector<1x128xf32>
    %12 = arith.mulf %5, %5 : vector<4x128xf32>
    %cst_11 = arith.constant dense<0.000000e+00> : vector<128xf32>
    %13 = vector.multi_reduction <add>, %12, %cst_11 [0] : vector<4x128xf32> to vector<128xf32>
    %14 = vector.shape_cast %13 : vector<128xf32> to vector<1x128xf32>
    %15 = arith.addf %11, %14 : vector<1x128xf32>
    %c0_12 = arith.constant 0 : index
    %c0_13 = arith.constant 0 : index
    %16 = vector.load %arg4[%c0_12, %c0_13] : memref<1x128xf32, #tpu.memory_space<vmem>>, vector<1x128xf32>
    tpu.vector_store %arg4[%c0_12, %c0_13], %15 {strides = array<i32>} : memref<1x128xf32, #tpu.memory_space<vmem>>, vector<1x128xf32>,
    return
  }
  func.func @transform_0(%arg0: i32) -> (i32, i32) {
    %c0_i32 = arith.constant 0 : i32
    %c0_i32_0 = arith.constant 0 : i32
    return %arg0, %c0_i32 : i32, i32
  }
  func.func @transform_1(%arg0: i32) -> (i32, i32) {
    %c0_i32 = arith.constant 0 : i32
    %c0_i32_0 = arith.constant 0 : i32
    %c0_i32_1 = arith.constant 0 : i32
    return %c0_i32, %c0_i32_0 : i32, i32
  }
  func.func @transform_2(%arg0: i32) -> (i32, i32) {
    %c0_i32 = arith.constant 0 : i32
    %c0_i32_0 = arith.constant 0 : i32
    %c0_i32_1 = arith.constant 0 : i32
    return %c0_i32, %c0_i32_0 : i32, i32
  }
  func.func @transform_3(%arg0: i32) -> (i32, i32) {
    %c0_i32 = arith.constant 0 : i32
    %c0_i32_0 = arith.constant 0 : i32
    %c0_i32_1 = arith.constant 0 : i32
    return %c0_i32, %c0_i32_0 : i32, i32
  }
}

</mosaic_0001>

<llo_original>
// kernel: tpu_custom_call.1
$region0: #{tpu_custom_call.1}
  #allocation0 [shape = 'u32[]', space=smem, size = 0x4, offset = 0x4, fixed_abs, tag = 'smem constant byte address 0x4 - core index']
  #allocation1 [shape = 'u32[72,128]{1,0:T(1,128)}', space=vmem, size = 0x9000, scoped, tag = 'internal scratch']
  %s0 = inlined_call_operand.hbm [shape: f32[4,128], index: 0, kind: input, shape index: {}]
  %s1 = inlined_call_operand.hbm [shape: f32[128,128], index: 1, kind: input, shape index: {}]
  %s2 = inlined_call_operand.hbm [shape: f32[1,128], index: 2, kind: output, shape index: {0}]
  %s3 = inlined_call_operand.hbm [shape: f32[1,128], index: 3, kind: output, shape index: {1}]
  %4 = xla_tuple %s2, %s3
  %s5 = sld [smem:[#allocation0]]
  $region38: #{tpu_custom_call.1} parent=0
    _
  %s7 = ssub.s32 1, %s5
  %s8 = scalar_select 0, %s7, %s5
  $region1: #{tpu_custom_call.1} parent=0
    #allocation2 [shape = 'u8[2048]{0}', space=vmem, size = 0x800, scoped, tag = 'input window, operand 0, single buffered']
    #allocation3 [shape = 's32[1]{0}', space=sflag, size = 0x4, scoped, tag = 'scoped memory for tpu_custom_call.1']
    #allocation4 [shape = 's32[1]{0}', space=sflag, size = 0x4, scoped, tag = 'scoped memory for tpu_custom_call.1']
    #allocation5 [shape = 'u8[65536]{0}', space=vmem, size = 0x10000, scoped, tag = 'input window, operand 1, single buffered']
    #allocation6 [shape = 's32[1]{0}', space=sflag, size = 0x4, scoped, tag = 'scoped memory for tpu_custom_call.1']
    #allocation7 [shape = 'u8[512]{0}', space=vmem, size = 0x400, scoped, tag = 'output window, operand 0, single buffered']
    #allocation8 [shape = 'u8[512]{0}', space=vmem, size = 0x400, scoped, tag = 'output window, operand 1, single buffered']
    #allocation9 [shape = 's32[1]{0}', space=sflag, size = 0x4, scoped, tag = 'scoped memory for tpu_custom_call.1']
    %9 = vsyncpa [#allocation3], 0
    %10 = vsyncpa [#allocation6], 0
    %11 = vsyncpa [#allocation4], 0
    %12 = vsyncpa [#allocation9], 0
    // Predicated region
    $region2: #{tpu_custom_call.1} parent=1 // pred_check
      _
    $region3: #{tpu_custom_call.1} parent=1 // pred_check_branch
      %14 = sbr.rel (0) target = $region5
    $region4: #{tpu_custom_call.1} parent=1 // pred_region
      %16 = vsyncadd [#allocation3], 0
      %s18 = sshll.u32 %s0, 4
      %s19 = int_to_ptr.hbm [resolvable:$true] %s18
      %s20 = sshll.u32 [#allocation2], 4
      %s21 = int_to_ptr.vmem [resolvable:$true] %s20
      %23 = dma.hbm_to_vmem [thread:$0]  %s19, 64, %s21, [#allocation3]
    $region5: #{tpu_custom_call.1} parent=1 // pred_fallthru
      _
    // Predicated region
    $region6: #{tpu_custom_call.1} parent=1 // pred_check
      _
    $region7: #{tpu_custom_call.1} parent=1 // pred_check_branch
      %25 = sbr.rel (0) target = $region9
    $region8: #{tpu_custom_call.1} parent=1 // pred_region
      %27 = vsyncadd [#allocation6], 0
      %s28 = sshll.u32 %s1, 4
      %s29 = int_to_ptr.hbm [resolvable:$true] %s28
      %s30 = sshll.u32 [#allocation5], 4
      %s31 = int_to_ptr.vmem [resolvable:$true] %s30
      %36 = dma.hbm_to_vmem [thread:$0]  %s29, 2048, %s31, [#allocation6], 128, 128, 8
    $region9: #{tpu_custom_call.1} parent=1 // pred_fallthru
      _
    // Predicated region
    $region10: #{tpu_custom_call.1} parent=1 // pred_check
      _
    $region11: #{tpu_custom_call.1} parent=1 // pred_check_branch
      %38 = sbr.rel (0) target = $region13
    $region12: #{tpu_custom_call.1} parent=1 // pred_region
      %40 = dma.done [#allocation3], 64
    $region13: #{tpu_custom_call.1} parent=1 // pred_fallthru
      _
    // Predicated region
    $region14: #{tpu_custom_call.1} parent=1 // pred_check
      _
    $region15: #{tpu_custom_call.1} parent=1 // pred_check_branch
      %42 = sbr.rel (0) target = $region17
    $region16: #{tpu_custom_call.1} parent=1 // pred_region
      %44 = dma.done [#allocation6], 2048
    $region17: #{tpu_custom_call.1} parent=1 // pred_fallthru
      _
    %p45 = scmp.eq.s32.totalorder 0, 0
    // Predicated region
    $region18: #{tpu_custom_call.1} parent=1 // pred_check
      %p46 = pneg %p45
    $region19: #{tpu_custom_call.1} parent=1 // pred_check_branch
      %48 = sbr.rel (%p46) target = $region21
    $region20: #{tpu_custom_call.1} parent=1 // pred_region
      %49 = vst [vmem:[#allocation7] sm:$0x1] 0.0
      %50 = vst [vmem:[#allocation8] sm:$0x1] 0.0
    $region21: #{tpu_custom_call.1} parent=1 // pred_fallthru
      _
    %v51 = vld [vmem:[#allocation2] sm:$0xf]
    %v52 = vld [vmem:[#allocation5] sm:$0xff]
    %v53 = vld [vmem:[#allocation5 + $0x8] sm:$0xff]
    %v54 = vld [vmem:[#allocation5 + $0x10] sm:$0xff]
    %v55 = vld [vmem:[#allocation5 + $0x18] sm:$0xff]
    %v56 = vld [vmem:[#allocation5 + $0x20] sm:$0xff]
    %v57 = vld [vmem:[#allocation5 + $0x28] sm:$0xff]
    %v58 = vld [vmem:[#allocation5 + $0x30] sm:$0xff]
    %v59 = vld [vmem:[#allocation5 + $0x38] sm:$0xff]
    %v60 = vld [vmem:[#allocation5 + $0x40] sm:$0xff]
    %v61 = vld [vmem:[#allocation5 + $0x48] sm:$0xff]
    %v62 = vld [vmem:[#allocation5 + $0x50] sm:$0xff]
    %v63 = vld [vmem:[#allocation5 + $0x58] sm:$0xff]
    %v64 = vld [vmem:[#allocation5 + $0x60] sm:$0xff]
    %v65 = vld [vmem:[#allocation5 + $0x68] sm:$0xff]
    %v66 = vld [vmem:[#allocation5 + $0x70] sm:$0xff]
    %v67 = vld [vmem:[#allocation5 + $0x78] sm:$0xff]
    %68 = vmatpush.msra.mxu0 %v67
    %69 = vmatpush.msra.mxu0 %v66
    %70 = vmatpush.msra.mxu0 %v65
    %71 = vmatpush.msra.mxu0 %v64
    %72 = vmatpush.msra.mxu0 %v63
    %73 = vmatpush.msra.mxu0 %v62
    %74 = vmatpush.msra.mxu0 %v61
    %75 = vmatpush.msra.mxu0 %v60
    %76 = vmatpush.msra.mxu0 %v59
    %77 = vmatpush.msra.mxu0 %v58
    %78 = vmatpush.msra.mxu0 %v57
    %79 = vmatpush.msra.mxu0 %v56
    %80 = vmatpush.msra.mxu0 %v55
    %81 = vmatpush.msra.mxu0 %v54
    %82 = vmatpush.msra.mxu0 %v53
    %83 = vmatpush.msra.mxu0 %v52
    %84 = vmatmul.f32.gmra.mxu0 %v51
    %v85 = vpop.f32.mrf.mxu0
    %v86 = vadd.f32 0.0, %v85
    %87 = vdwg.mxu0
    %v88 = vld [vmem:[#allocation7] sm:$0x1]
    %vm89 = vcmask 1043456
    %v90 = vsel %vm89, %v86, 0.0
    %v91 = vrot.slane %v90, 4
    %v92 = vadd.f32 %v90, %v91
    %v93 = vrot.slane %v92, 2
    %v94 = vadd.f32 %v92, %v93
    %v95 = vrot.slane %v94, 1
    %v96 = vadd.f32 %v94, %v95
    %v97 = vadd.f32 %v88, %v96
    %98 = vst [vmem:[#allocation7] sm:$0x1] %v97
    %v99 = vld [vmem:[#allocation8] sm:$0x1]
    %v100 = vmul.f32 %v86, %v86
    %v101 = vsel %vm89, %v100, 0.0
    %v102 = vrot.slane %v101, 4
    %v103 = vadd.f32 %v101, %v102
    %v104 = vrot.slane %v103, 2
    %v105 = vadd.f32 %v103, %v104
    %v106 = vrot.slane %v105, 1
    %v107 = vadd.f32 %v105, %v106
    %v108 = vadd.f32 %v99, %v107
    %109 = vst [vmem:[#allocation8] sm:$0x1] %v108
    // Predicated region
    $region22: #{tpu_custom_call.1} parent=1 // pred_check
      _
    $region23: #{tpu_custom_call.1} parent=1 // pred_check_branch
      %111 = sbr.rel (0) target = $region25
    $region24: #{tpu_custom_call.1} parent=1 // pred_region
      %113 = vsyncadd [#allocation4], 0
      %s115 = sshll.u32 [#allocation7], 4
      %s116 = int_to_ptr.vmem [resolvable:$true] %s115
      %s117 = sshll.u32 %s2, 4
      %s118 = int_to_ptr.hbm [resolvable:$true] %s117
      %120 = dma.vmem_to_hbm [thread:$0]  %s116, 16, %s118, [#allocation4]
    $region25: #{tpu_custom_call.1} parent=1 // pred_fallthru
      _
    // Predicated region
    $region26: #{tpu_custom_call.1} parent=1 // pred_check
      _
    $region27: #{tpu_custom_call.1} parent=1 // pred_check_branch
      %122 = sbr.rel (0) target = $region29
    $region28: #{tpu_custom_call.1} parent=1 // pred_region
      %124 = vsyncadd [#allocation9], 0
      %s126 = sshll.u32 [#allocation8], 4
      %s127 = int_to_ptr.vmem [resolvable:$true] %s126
      %s128 = sshll.u32 %s3, 4
      %s129 = int_to_ptr.hbm [resolvable:$true] %s128
      %131 = dma.vmem_to_hbm [thread:$0]  %s127, 16, %s129, [#allocation9]
    $region29: #{tpu_custom_call.1} parent=1 // pred_fallthru
      _
    // Predicated region
    $region30: #{tpu_custom_call.1} parent=1 // pred_check
      _
    $region31: #{tpu_custom_call.1} parent=1 // pred_check_branch
      %133 = sbr.rel (0) target = $region33
    $region32: #{tpu_custom_call.1} parent=1 // pred_region
      %135 = dma.done [#allocation4], 16
    $region33: #{tpu_custom_call.1} parent=1 // pred_fallthru
      _
    // Predicated region
    $region34: #{tpu_custom_call.1} parent=1 // pred_check
      _
    $region35: #{tpu_custom_call.1} parent=1 // pred_check_branch
      %137 = sbr.rel (0) target = $region37
    $region36: #{tpu_custom_call.1} parent=1 // pred_region
      %139 = dma.done [#allocation9], 16
    $region37: #{tpu_custom_call.1} parent=1 // pred_fallthru
      _
    %140 = vsyncpa [#allocation3], 1
    %141 = vsyncpa [#allocation6], 1
    %142 = vsyncpa [#allocation4], 1
    %143 = vsyncpa [#allocation9], 1

</llo_original>
